<compile_context>
chip_gen: v7x
topology: tpu7x:2x2x1
jax: 0.10.0
libtpu: 0.0.40
codegen_flags: <defaults>
</compile_context>

<pallas_src>
import numpy as np
import jax
import jax.numpy as jnp
from jax.experimental import pallas as pl
from jax.experimental.pallas import tpu as pltpu


# ------------------------------ helpers ------------------------------------ #
def _round_up(x, m):
    return ((x + m - 1) // m) * m


def _row_chunk(ti, target=16):
    """Largest chunk <= target that divides the i-tile (ti is always a multiple of 8)."""
    for c in (target, 8):
        if ti % c == 0:
            return c
    return ti


def _default_compute_dtype():
    """bf16 elementwise on chips with bf16 VPU/EUP (v6e, v7x); f32 on v5e and older."""
    try:
        kind = jax.devices()[0].device_kind.lower()
    except Exception:
        return jnp.bfloat16
    if any(tag in kind for tag in ("v2", "v3", "v4", "v5")):
        return jnp.float32
    return jnp.bfloat16


# ----------------------------- Pallas kernel ------------------------------- #
def _pair_proj_kernel(a_ref, c_ref, wo_ref, bo_ref, out_ref):
    """One (TI, TJ) tile of the pair grid for one batch element.

    a_ref  : (1, TI, H) cdtype = seq[i-tile] @ W1 + b_table (bias folded)
    c_ref  : (1, TJ, H) cdtype = seq[j-tile] @ W2
    wo_ref : (H, C)     bf16   = concat([W_out1, W_out2], axis=1)
    bo_ref : (1, C)     f32    = concat([b_out1, b_out2], axis=1)
    out_ref: (1, TI, TJ, C) f32 fused event+argument logits tile

    The i-tile is processed in TC-row chunks via lax.fori_loop so the live
    (TC, TJ, H) intermediate stays small (bounds VMEM / vreg live ranges).
    """
    TI = a_ref.shape[1]
    TJ = c_ref.shape[1]
    H = a_ref.shape[2]
    C = wo_ref.shape[1]
    TC = _row_chunk(TI)
    n_chunks = TI // TC

    def body(ci, carry):
        r0 = pl.multiple_of(ci * TC, TC)
        a_chunk = a_ref[0, pl.ds(r0, TC), :]                 # [TC, H]   (cdtype)
        c_tile = c_ref[0]                                    # [TJ, H]   (cdtype)
        s = a_chunk[:, None, :] + c_tile[None, :, :]         # [TC, TJ, H] (VPU)
        s = jax.nn.gelu(s, approximate=True)                 # tanh GELU (VPU+EUP)
        s2 = s.reshape(TC * TJ, H).astype(jnp.bfloat16)      # bf16 MXU operand
        logits = jnp.dot(s2, wo_ref[...],
                         preferred_element_type=jnp.float32)  # [TC*TJ, C] f32
        logits = logits + bo_ref[...]                        # f32 bias add
        out_ref[0, pl.ds(r0, TC), :, :] = logits.reshape(TC, TJ, C)
        return carry

    jax.lax.fori_loop(0, n_chunks, body, 0, unroll=False)


def pairwise_logits(seq, w1, w2, bt, wo1, bo1, wo2, bo2, *,
                    tile_i=128, tile_j=64, compute_dtype=None):
    """seq: [B,S,H].  Returns (event_logits [B,S,S,E], argument_logits [B,S,S,R]).

    tile_i / tile_j control the pair-grid tile.  The in-kernel row-chunked loop
    bounds the live intermediate, so large tiles (128 x 64) are safe on all
    generations, including v7x (64 MiB VMEM) — do NOT shrink tile_j on v7x.
    """
    B, S, H = seq.shape
    E = wo1.shape[1]
    R = wo2.shape[1]
    C = E + R
    if compute_dtype is None:
        compute_dtype = _default_compute_dtype()

    # --- Hoisted GEMMs (once per batch, not per (i,j) tile) ------------------ #
    # bf16 operands / f32 accumulation; table bias folded into `a`; a/c emitted
    # directly in the kernel's elementwise dtype.
    seq_bf = seq.astype(jnp.bfloat16)
    a = jnp.einsum("bsh,hk->bsk", seq_bf, w1.astype(jnp.bfloat16),
                   preferred_element_type=jnp.float32) + bt.astype(jnp.float32)
    c = jnp.einsum("bsh,hk->bsk", seq_bf, w2.astype(jnp.bfloat16),
                   preferred_element_type=jnp.float32)
    a = a.astype(compute_dtype)
    c = c.astype(compute_dtype)

    # --- Fused projection weights (one MXU pass) ----------------------------- #
    wo = jnp.concatenate([wo1, wo2], axis=1).astype(jnp.bfloat16)   # [H, C]
    bo = jnp.concatenate([bo1, bo2], axis=1).astype(jnp.float32)    # [1, C]

    # --- Tile / pad the pair grid -------------------------------------------- #
    TI = tile_i if S >= tile_i else _round_up(S, 8)
    TJ = tile_j if S >= tile_j else _round_up(S, 8)
    Si = _round_up(S, TI)
    Sj = _round_up(S, TJ)
    if Si != S:
        a = jnp.pad(a, ((0, 0), (0, Si - S), (0, 0)))
    if Sj != S:
        c = jnp.pad(c, ((0, 0), (0, Sj - S), (0, 0)))
    gi, gj = Si // TI, Sj // TJ

    # Grid: i-tiles outermost so the parallel grid shards across v7x's 2 TCs
    # even with tiny B; j innermost so the a-tile stays grid-resident.
    grid_spec = pltpu.PrefetchScalarGridSpec(
        num_scalar_prefetch=0,
        grid=(gi, B, gj),
        in_specs=[
            pl.BlockSpec((1, TI, H), lambda i, b, j: (b, i, 0)),   # a (i-tile)
            pl.BlockSpec((1, TJ, H), lambda i, b, j: (b, j, 0)),   # c (j-tile)
            pl.BlockSpec((H, C), lambda i, b, j: (0, 0)),          # fused out weight
            pl.BlockSpec((1, C), lambda i, b, j: (0, 0)),          # fused out bias
        ],
        out_specs=[
            pl.BlockSpec((1, TI, TJ, C), lambda i, b, j: (b, i, j, 0)),
        ],
    )

    isz = jnp.dtype(compute_dtype).itemsize
    cost = pl.CostEstimate(
        flops=int(2 * B * Si * Sj * H * C + B * Si * Sj * H),  # projection + broadcast add
        transcendentals=int(B * Si * Sj * H),                  # tanh in the GELU
        bytes_accessed=int(
            B * Si * Sj * C * 4          # logits writeback
            + B * Si * H * isz           # a: grid-resident across inner j axis (read once)
            + B * Sj * H * isz * gi      # c: re-read for every i tile
            + H * C * 2 + C * 4          # fused weights / bias
        ),
    )

    (out,) = pl.pallas_call(
        _pair_proj_kernel,
        out_shape=(jax.ShapeDtypeStruct((B, Si, Sj, C), jnp.float32),),
        grid_spec=grid_spec,
        compiler_params=pltpu.CompilerParams(
            dimension_semantics=("parallel", "parallel", "parallel"),
            vmem_limit_bytes=48 * 1024 * 1024,   # below v7x's 64 MiB physical ceiling
        ),
        cost_estimate=cost,
    )(a, c, wo, bo)

    out = out[:, :S, :S, :]                  # drop padded rows/cols
    return out[..., :E], out[..., E:]


# ------------------------------ JAX glue ----------------------------------- #
def _cross_entropy(logits, labels):
    """Per-row softmax cross entropy (== nn.CrossEntropyLoss(reduction='none'))."""
    logits = logits.astype(jnp.float32)
    lse = jax.nn.logsumexp(logits, axis=-1)
    picked = jnp.take_along_axis(logits, labels[..., None].astype(jnp.int32), axis=-1)[..., 0]
    return lse - picked


def table_forward(sequence_output, table, params):
    """Mirrors Table.forward (eval mode) given precomputed sequence_output [B,S,H]."""
    event_logits_all, argument_logits_all = pairwise_logits(
        sequence_output,
        params["w1"], params["w2"], params["bt"],
        params["wo1"], params["bo1"], params["wo2"], params["bo2"],
    )

    total_loss = jnp.float32(0.0)
    device_results = []
    for k in range(len(table)):
        n = int(table[k].shape[0])
        labels = jnp.asarray(table[k], dtype=jnp.int32)                 # [n, n]
        ev = event_logits_all[k, 1:n + 1, 1:n + 1]                      # [n, n, E]
        ar = argument_logits_all[k, 1:n + 1, 1:n + 1]                   # [n, n, R]

        mask1 = jnp.eye(n, dtype=jnp.int32)                             # diagonal
        mask2 = jnp.ones((n, n), jnp.int32) - mask1                     # off-diagonal

        # event loss: CE over all cells with (labels*mask1), masked-select diag, mean
        loss1_all = _cross_entropy(ev.reshape(n * n, -1), (labels * mask1).reshape(-1))
        m1f = mask1.reshape(-1).astype(jnp.float32)
        total_loss = total_loss + jnp.sum(loss1_all * m1f) / jnp.sum(m1f)

        # argument loss: CE over all cells with (labels*mask2), masked-select off-diag, mean
        loss2_all = _cross_entropy(ar.reshape(n * n, -1), (labels * mask2).reshape(-1))
        m2f = mask2.reshape(-1).astype(jnp.float32)
        total_loss = total_loss + jnp.sum(loss2_all * m2f) / jnp.sum(m2f)

        event_res = jnp.argmax(ev, axis=2).astype(jnp.int32)
        argument_res = jnp.argmax(ar + jnp.transpose(ar, (1, 0, 2)), axis=2).astype(jnp.int32)
        device_results.append(event_res * mask1 + argument_res * mask2)

    # Single host sync at the end (no per-example device_get stalls).
    results = [np.asarray(r) for r in jax.device_get(device_results)]
    return total_loss, results


# ------------------------------- demo -------------------------------------- #
def _init_params(key, H, E, R):
    ks = jax.random.split(key, 8)
    scale_t = 1.0 / np.sqrt(2 * H)
    scale_o = 1.0 / np.sqrt(H)
    return {
        # nn.Linear(2H, H) split into the x-half and y-half (already transposed for x @ W)
        "w1": jax.random.uniform(ks[0], (H, H), jnp.float32, -scale_t, scale_t),
        "w2": jax.random.uniform(ks[1], (H, H), jnp.float32, -scale_t, scale_t),
        "bt": jax.random.uniform(ks[2], (1, H), jnp.float32, -scale_t, scale_t),
        "wo1": jax.random.uniform(ks[3], (H, E), jnp.float32, -scale_o, scale_o),
        "bo1": jax.random.uniform(ks[4], (1, E), jnp.float32, -scale_o, scale_o),
        "wo2": jax.random.uniform(ks[5], (H, R), jnp.float32, -scale_o, scale_o),
        "bo2": jax.random.uniform(ks[6], (1, R), jnp.float32, -scale_o, scale_o),
    }


if __name__ == "__main__":
    B, S, H = 2, 8, 32          # batch, seq-len, hidden_size
    E, R = 8, 16                # event_size, role_size

    key = jax.random.PRNGKey(0)
    k_seq, k_par, k_t0, k_t1 = jax.random.split(key, 4)

    # Stand-in for the BERT encoder output (see TODO(synk) at top of file).
    sequence_output = jax.random.normal(k_seq, (B, S, H), jnp.float32)
    params = _init_params(k_par, H, E, R)

    # Variable-size per-example label tables (n_k + 1 <= S).
    table = [
        np.asarray(jax.random.randint(k_t0, (6, 6), 0, min(E, R)), dtype=np.int64),
        np.asarray(jax.random.randint(k_t1, (5, 5), 0, min(E, R)), dtype=np.int64),
    ]

    total_loss, results = table_forward(sequence_output, table, params)
    jax.block_until_ready(total_loss)
    assert np.isfinite(float(total_loss))
    assert results[0].shape == (6, 6) and results[1].shape == (5, 5)
    print("KERNEL_OK")
</pallas_src>

<mosaic_0001>
module attributes {stable_mosaic.version = 11 : i64} {
  func.func @_pair_proj_kernel(%arg0: i32, %arg1: i32, %arg2: i32, %arg3: memref<1x8x32xbf16, #tpu.memory_space<vmem>>, %arg4: memref<1x8x32xbf16, #tpu.memory_space<vmem>>, %arg5: memref<32x24xbf16, #tpu.memory_space<vmem>>, %arg6: memref<1x24xf32, #tpu.memory_space<vmem>>, %arg7: memref<1x8x8x24xf32, #tpu.memory_space<vmem>>) attributes {dimension_semantics = [#tpu.dimension_semantics<parallel>, #tpu.dimension_semantics<parallel>, #tpu.dimension_semantics<parallel>], iteration_bounds = array<i64: 1, 2, 1>, scalar_prefetch = 0 : i64, scratch_operands = 0 : i64, tpu.core_type = #tpu.core_type<tc>, window_params = [{transform_indices = @transform_0, window_bounds = array<i64: 1, 8, 32>}, {transform_indices = @transform_1, window_bounds = array<i64: 1, 8, 32>}, {pipeline_mode = #tpu.pipeline_mode<synchronous>, transform_indices = @transform_2, window_bounds = array<i64: 32, 24>}, {pipeline_mode = #tpu.pipeline_mode<synchronous>, transform_indices = @transform_3, window_bounds = array<i64: 1, 24>}, {transform_indices = @transform_4, window_bounds = array<i64: 1, 8, 8, 24>}]} {
    %c0_i32 = arith.constant 0 : i32
    %c8_i32 = arith.constant 8 : i32
    %0 = arith.muli %c0_i32, %c8_i32 : i32
    %1 = tpu.assume_multiple %0, 8 : i32
    %c0 = arith.constant 0 : index
    %2 = arith.index_cast %1 : i32 to index
    %c0_0 = arith.constant 0 : index
    %3 = vector.load %arg3[%c0, %2, %c0_0] : memref<1x8x32xbf16, #tpu.memory_space<vmem>>, vector<1x8x32xbf16>
    %4 = vector.shape_cast %3 : vector<1x8x32xbf16> to vector<8x32xbf16>
    %c0_1 = arith.constant 0 : index
    %c0_2 = arith.constant 0 : index
    %c0_3 = arith.constant 0 : index
    %5 = vector.load %arg4[%c0_1, %c0_2, %c0_3] : memref<1x8x32xbf16, #tpu.memory_space<vmem>>, vector<1x8x32xbf16>
    %6 = vector.shape_cast %5 : vector<1x8x32xbf16> to vector<8x32xbf16>
    %7 = vector.shape_cast %4 : vector<8x32xbf16> to vector<8x1x32xbf16>
    %8 = vector.shape_cast %6 : vector<8x32xbf16> to vector<1x8x32xbf16>
    %9 = vector.broadcast %7 : vector<8x1x32xbf16> to vector<8x8x32xbf16>
    %10 = vector.broadcast %8 : vector<1x8x32xbf16> to vector<8x8x32xbf16>
    %11 = arith.addf %9, %10 : vector<8x8x32xbf16>
    %12 = arith.mulf %11, %11 : vector<8x8x32xbf16>
    %13 = arith.mulf %11, %12 : vector<8x8x32xbf16>
    %cst = arith.constant 4.467770e-02 : bf16
    %14 = vector.broadcast %cst : bf16 to vector<8x8x32xbf16>
    %15 = arith.mulf %14, %13 : vector<8x8x32xbf16>
    %16 = arith.addf %11, %15 : vector<8x8x32xbf16>
    %cst_4 = arith.constant 7.968750e-01 : bf16
    %17 = vector.broadcast %cst_4 : bf16 to vector<8x8x32xbf16>
    %18 = arith.mulf %17, %16 : vector<8x8x32xbf16>
    %19 = math.tanh %18 : vector<8x8x32xbf16>
    %cst_5 = arith.constant 1.000000e+00 : bf16
    %20 = vector.broadcast %cst_5 : bf16 to vector<8x8x32xbf16>
    %21 = arith.addf %20, %19 : vector<8x8x32xbf16>
    %cst_6 = arith.constant 5.000000e-01 : bf16
    %22 = vector.broadcast %cst_6 : bf16 to vector<8x8x32xbf16>
    %23 = arith.mulf %22, %21 : vector<8x8x32xbf16>
    %24 = arith.mulf %11, %23 : vector<8x8x32xbf16>
    %25 = vector.shape_cast %24 : vector<8x8x32xbf16> to vector<64x32xbf16>
    %c0_7 = arith.constant 0 : index
    %c0_8 = arith.constant 0 : index
    %26 = vector.load %arg5[%c0_7, %c0_8] : memref<32x24xbf16, #tpu.memory_space<vmem>>, vector<32x24xbf16>
    %cst_9 = arith.constant dense<0.000000e+00> : vector<64x24xf32>
    %27 = tpu.matmul %25, %26, %cst_9 {dimension_numbers = #tpu.dot_dimension_numbers<[1], [0], [0], [1], [0, 0, 1, 1], [], []>} : vector<64x32xbf16>, vector<32x24xbf16>, vector<64x24xf32> -> vector<64x24xf32>
    %c0_10 = arith.constant 0 : index
    %c0_11 = arith.constant 0 : index
    %28 = vector.load %arg6[%c0_10, %c0_11] : memref<1x24xf32, #tpu.memory_space<vmem>>, vector<1x24xf32>
    %29 = vector.broadcast %28 : vector<1x24xf32> to vector<64x24xf32>
    %30 = arith.addf %27, %29 : vector<64x24xf32>
    %31 = vector.shape_cast %30 : vector<64x24xf32> to vector<8x8x24xf32>
    %c0_12 = arith.constant 0 : index
    %32 = arith.index_cast %1 : i32 to index
    %c0_13 = arith.constant 0 : index
    %c0_14 = arith.constant 0 : index
    %33 = vector.load %arg7[%c0_12, %32, %c0_13, %c0_14] : memref<1x8x8x24xf32, #tpu.memory_space<vmem>>, vector<1x8x8x24xf32>
    %34 = vector.shape_cast %33 : vector<1x8x8x24xf32> to vector<8x8x24xf32>
    %35 = vector.shape_cast %31 : vector<8x8x24xf32> to vector<1x8x8x24xf32>
    tpu.vector_store %arg7[%c0_12, %32, %c0_13, %c0_14], %35 {strides = array<i32>} : memref<1x8x8x24xf32, #tpu.memory_space<vmem>>, vector<1x8x8x24xf32>,
    %c1_i32 = arith.constant 1 : i32
    return
  }
  func.func @transform_0(%arg0: i32, %arg1: i32, %arg2: i32) -> (i32, i32, i32) {
    %c0_i32 = arith.constant 0 : i32
    %c0_i32_0 = arith.constant 0 : i32
    return %arg1, %arg0, %c0_i32 : i32, i32, i32
  }
  func.func @transform_1(%arg0: i32, %arg1: i32, %arg2: i32) -> (i32, i32, i32) {
    %c0_i32 = arith.constant 0 : i32
    %c0_i32_0 = arith.constant 0 : i32
    return %arg1, %arg2, %c0_i32 : i32, i32, i32
  }
  func.func @transform_2(%arg0: i32, %arg1: i32, %arg2: i32) -> (i32, i32) {
    %c0_i32 = arith.constant 0 : i32
    %c0_i32_0 = arith.constant 0 : i32
    %c0_i32_1 = arith.constant 0 : i32
    return %c0_i32, %c0_i32_0 : i32, i32
  }
  func.func @transform_3(%arg0: i32, %arg1: i32, %arg2: i32) -> (i32, i32) {
    %c0_i32 = arith.constant 0 : i32
    %c0_i32_0 = arith.constant 0 : i32
    %c0_i32_1 = arith.constant 0 : i32
    return %c0_i32, %c0_i32_0 : i32, i32
  }
  func.func @transform_4(%arg0: i32, %arg1: i32, %arg2: i32) -> (i32, i32, i32, i32) {
    %c0_i32 = arith.constant 0 : i32
    %c0_i32_0 = arith.constant 0 : i32
    return %arg1, %arg0, %arg2, %c0_i32 : i32, i32, i32, i32
  }
}

</mosaic_0001>

<llo_original>
// kernel: tpu_custom_call.1
$region0: #{tpu_custom_call.1}
  #allocation0 [shape = 'u32[]', space=smem, size = 0x4, offset = 0x4, fixed_abs, tag = 'smem constant byte address 0x4 - core index']
  #allocation1 [shape = 'u32[144,128]{1,0:T(1,128)}', space=vmem, size = 0x12000, scoped, tag = 'internal scratch']
  %s0 = inlined_call_operand.vmem [shape: bf16[2,8,32], index: 0, kind: input, shape index: {}]
  %s1 = inlined_call_operand.vmem [shape: bf16[2,8,32], index: 1, kind: input, shape index: {}]
  %s2 = inlined_call_operand.vmem [shape: bf16[32,24], index: 2, kind: input, shape index: {}]
  %s3 = inlined_call_operand.vmem [shape: f32[1,24], index: 3, kind: input, shape index: {}]
  %s4 = inlined_call_operand.hbm [shape: f32[2,8,8,24], index: 4, kind: output, shape index: {}]
  %s5 = sld [smem:[#allocation0]]
  $region49: #{tpu_custom_call.1} parent=0
    _
  %s7 = ssub.s32 1, %s5
  %s8 = scalar_select 0, %s7, %s5
  $region1: #{tpu_custom_call.1} parent=0
    #allocation2 [shape = 'u8[65536]{0}', space=vmem, size = 0x10000, scoped, tag = 'output window, operand 0']
    #allocation3 [shape = 's32[2]{0}', space=sflag, size = 0x8, scoped, tag = 'scoped memory for tpu_custom_call.1']
    %9 = vsyncpa [#allocation3], 0
    %s10 = scalar_lea.sflag [#allocation3], 1
    %11 = vsyncpa %s10, 0
    loop: start=0, step=1, limit=4
    $region2: #{tpu_custom_call.1} parent=1 // loop_pre_header
      _
    $region3: #{tpu_custom_call.1} parent=1 // loop_header
      %s13 = sphi 0, %s17
      %p14 = scmp.ge.s32.totalorder %s13, 4
      %s20 = sphi 0, %s39
      %s21 = sphi 0, %s35
      %s22 = sphi 0, %s31
      %s23 = sphi 0, %s20
      %s24 = sphi 0, %s21
      %s25 = sphi 0, %s22
      %s26 = sphi 0, %s23
      %s27 = sphi 0, %s24
      %s28 = sphi 0, %s25
      %s44 = sphi 0, %s46
      %s47 = sphi 0, %s44
      %s48 = sphi 0, %s47
      %s64 = sphi 0, %s48
      %s72 = sphi 0, %s74
      %s75 = sphi 0, %s72
      %s76 = sphi 0, %s75
      %s92 = sphi 0, %s76
      %s96 = sphi 0, %s96
      %s98 = sphi 0, %s96
      %s99 = sphi 0, %s98
      %s113 = sphi 0, %s99
      %s117 = sphi 0, %s117
      %s119 = sphi 0, %s117
      %s120 = sphi 0, %s119
      %s134 = sphi 0, %s120
      %s144 = sphi 0, %s146
      %s147 = sphi 0, %s144
      %s148 = sphi 0, %s147
      %s164 = sphi 0, %s148
    $region4: #{tpu_custom_call.1} parent=1 // loop_header_branch
      %16 = sbr.rel (%p14) target = $region8
    $region5: #{tpu_custom_call.1} parent=1 // loop_body
      %s18 = ssub.s32 %s13, 1
      %s19 = ssub.s32 %s13, 2
      %s29 = sadd.s32 1, %s22
      %p30 = scmp.ge.s32.totalorder %s29, 1
      %s31 = scalar_select %p30, 0, %s29
      %s32 = sadd.s32 1, %s21
      %s33 = scalar_select %p30, %s32, %s21
      %p34 = scmp.ge.s32.totalorder %s33, 2
      %s35 = scalar_select %p34, 0, %s33
      %s36 = sadd.s32 1, %s20
      %s37 = scalar_select %p34, %s36, %s20
      %p38 = scmp.ge.s32.totalorder %s37, 1
      %s39 = scalar_select %p38, 0, %s37
      %s40 = ssub.s32 %s21, %s35
      %s41 = ssub.s32 %s20, %s39
      %s42 = sor.u32 %s40, %s41
      %p43 = scmp.eq.s32.totalorder %s42, 0
      %s45 = sadd.s32 %s44, 1
      %s46 = scalar_select %p43, %s44, %s45
      %p49 = pneg %p43
      %p50 = scmp.eq.s32.totalorder %s13, 1
      %p51 = por %p49, %p50
      %p52 = scmp.ne.s32.totalorder %s44, %s47
      %p53 = scmp.eq.s32.totalorder %s13, 0
      %p54 = por %p52, %p53
      %p55 = scmp.ne.s32.totalorder %s44, %s47
      %p56 = scmp.eq.s32.totalorder %s18, 1
      %p57 = por %p55, %p56
      %p58 = scmp.ne.s32.totalorder %s47, %s48
      %p59 = scmp.eq.s32.totalorder %s18, 0
      %p60 = por %p58, %p59
      %p61 = scmp.ne.s32.totalorder %s47, %s48
      %p62 = scmp.eq.s32.totalorder %s19, 1
      %p63 = por %p61, %p62
      %p65 = scmp.ne.s32.totalorder %s48, %s64
      %p66 = scmp.eq.s32.totalorder %s19, 0
      %p67 = por %p65, %p66
      %s68 = ssub.s32 %s21, %s35
      %s69 = ssub.s32 %s22, %s31
      %s70 = sor.u32 %s68, %s69
      %p71 = scmp.eq.s32.totalorder %s70, 0
      %s73 = sadd.s32 %s72, 1
      %s74 = scalar_select %p71, %s72, %s73
      %p77 = pneg %p71
      %p78 = scmp.eq.s32.totalorder %s13, 1
      %p79 = por %p77, %p78
      %p80 = scmp.ne.s32.totalorder %s72, %s75
      %p81 = scmp.eq.s32.totalorder %s13, 0
      %p82 = por %p80, %p81
      %p83 = scmp.ne.s32.totalorder %s72, %s75
      %p84 = scmp.eq.s32.totalorder %s18, 1
      %p85 = por %p83, %p84
      %p86 = scmp.ne.s32.totalorder %s75, %s76
      %p87 = scmp.eq.s32.totalorder %s18, 0
      %p88 = por %p86, %p87
      %p89 = scmp.ne.s32.totalorder %s75, %s76
      %p90 = scmp.eq.s32.totalorder %s19, 1
      %p91 = por %p89, %p90
      %p93 = scmp.ne.s32.totalorder %s76, %s92
      %p94 = scmp.eq.s32.totalorder %s19, 0
      %p95 = por %p93, %p94
      %s97 = sadd.s32 %s96, 1
      %p100 = scmp.eq.s32.totalorder %s13, 1
      %p101 = scmp.ne.s32.totalorder %s96, %s98
      %p102 = scmp.eq.s32.totalorder %s13, 0
      %p103 = por %p101, %p102
      %p104 = scmp.ne.s32.totalorder %s96, %s98
      %p105 = scmp.eq.s32.totalorder %s18, 1
      %p106 = por %p104, %p105
      %p107 = scmp.ne.s32.totalorder %s98, %s99
      %p108 = scmp.eq.s32.totalorder %s18, 0
      %p109 = por %p107, %p108
      %p110 = scmp.ne.s32.totalorder %s98, %s99
      %p111 = scmp.eq.s32.totalorder %s19, 1
      %p112 = por %p110, %p111
      %p114 = scmp.ne.s32.totalorder %s99, %s113
      %p115 = scmp.eq.s32.totalorder %s19, 0
      %p116 = por %p114, %p115
      %s118 = sadd.s32 %s117, 1
      %p121 = scmp.eq.s32.totalorder %s13, 1
      %p122 = scmp.ne.s32.totalorder %s117, %s119
      %p123 = scmp.eq.s32.totalorder %s13, 0
      %p124 = por %p122, %p123
      %p125 = scmp.ne.s32.totalorder %s117, %s119
      %p126 = scmp.eq.s32.totalorder %s18, 1
      %p127 = por %p125, %p126
      %p128 = scmp.ne.s32.totalorder %s119, %s120
      %p129 = scmp.eq.s32.totalorder %s18, 0
      %p130 = por %p128, %p129
      %p131 = scmp.ne.s32.totalorder %s119, %s120
      %p132 = scmp.eq.s32.totalorder %s19, 1
      %p133 = por %p131, %p132
      %p135 = scmp.ne.s32.totalorder %s120, %s134
      %p136 = scmp.eq.s32.totalorder %s19, 0
      %p137 = por %p135, %p136
      %s138 = ssub.s32 %s21, %s35
      %s139 = ssub.s32 %s20, %s39
      %s140 = sor.u32 %s138, %s139
      %s141 = ssub.s32 %s22, %s31
      %s142 = sor.u32 %s140, %s141
      %p143 = scmp.eq.s32.totalorder %s142, 0
      %s145 = sadd.s32 %s144, 1
      %s146 = scalar_select %p143, %s144, %s145
      %p149 = pneg %p143
      %p150 = scmp.eq.s32.totalorder %s13, 1
      %p151 = por %p149, %p150
      %p152 = scmp.ne.s32.totalorder %s144, %s147
      %p153 = scmp.eq.s32.totalorder %s13, 0
      %p154 = por %p152, %p153
      %p155 = scmp.ne.s32.totalorder %s144, %s147
      %p156 = scmp.eq.s32.totalorder %s18, 1
      %p157 = por %p155, %p156
      %p158 = scmp.ne.s32.totalorder %s147, %s148
      %p159 = scmp.eq.s32.totalorder %s18, 0
      %p160 = por %p158, %p159
      %p161 = scmp.ne.s32.totalorder %s147, %s148
      %p162 = scmp.eq.s32.totalorder %s19, 1
      %p163 = por %p161, %p162
      %p165 = scmp.ne.s32.totalorder %s148, %s164
      %p166 = scmp.eq.s32.totalorder %s19, 0
      %p167 = por %p165, %p166
      %p168 = scmp.le.s32.totalorder 1, %s13
      %p169 = scmp.lt.s32.totalorder %s13, 3
      %p170 = pnand %p168, %p169
      %p171 = pneg %p170
      // Predicated region
      $region9: #{tpu_custom_call.1} parent=5 // pred_check
        _
      $region10: #{tpu_custom_call.1} parent=5 // pred_check_branch
        %173 = sbr.rel (%p170) target = $region12
      $region11: #{tpu_custom_call.1} parent=5 // pred_region
        %s174 = ssub.s32 %s13, 1
        // Predicated region
        $region13: #{tpu_custom_call.1} parent=11 // pred_check
          %p175 = pneg %p109
        $region14: #{tpu_custom_call.1} parent=11 // pred_check_branch
          %177 = sbr.rel (%p175) target = $region16
        $region15: #{tpu_custom_call.1} parent=11 // pred_region
          _
        $region16: #{tpu_custom_call.1} parent=11 // pred_fallthru
          _
        // Predicated region
        $region17: #{tpu_custom_call.1} parent=11 // pred_check
          %p178 = pneg %p130
        $region18: #{tpu_custom_call.1} parent=11 // pred_check_branch
          %180 = sbr.rel (%p178) target = $region20
        $region19: #{tpu_custom_call.1} parent=11 // pred_region
          _
        $region20: #{tpu_custom_call.1} parent=11 // pred_fallthru
          _
      $region12: #{tpu_custom_call.1} parent=5 // pred_fallthru
        _
      %p181 = scmp.lt.s32.totalorder %s13, 2
      // Predicated region
      $region21: #{tpu_custom_call.1} parent=5 // pred_check
        %p182 = pneg %p181
      $region22: #{tpu_custom_call.1} parent=5 // pred_check_branch
        %184 = sbr.rel (%p182) target = $region24
      $region23: #{tpu_custom_call.1} parent=5 // pred_region
        // Predicated region
        $region25: #{tpu_custom_call.1} parent=23 // pred_check
          %p185 = pneg %p54
        $region26: #{tpu_custom_call.1} parent=23 // pred_check_branch
          %187 = sbr.rel (%p185) target = $region28
        $region27: #{tpu_custom_call.1} parent=23 // pred_region
          %p188 = scmp.lt.s32.totalorder %s21, 1
          %s189 = scalar_select %p188, %s21, 1
          %p190 = scmp.lt.s32.totalorder %s20, 0
          %s191 = scalar_select %p190, %s20, 0
          %s192 = sadd.s32 %s191, %s189
          %s193 = smul.addr %s192, 4
          %s194 = scalar_lea.vmem %s0, %s193
        $region28: #{tpu_custom_call.1} parent=23 // pred_fallthru
          _
        // Predicated region
        $region29: #{tpu_custom_call.1} parent=23 // pred_check
          %p195 = pneg %p82
        $region30: #{tpu_custom_call.1} parent=23 // pred_check_branch
          %197 = sbr.rel (%p195) target = $region32
        $region31: #{tpu_custom_call.1} parent=23 // pred_region
          %p198 = scmp.lt.s32.totalorder %s21, 1
          %s199 = scalar_select %p198, %s21, 1
          %p200 = scmp.lt.s32.totalorder %s22, 0
          %s201 = scalar_select %p200, %s22, 0
          %s202 = sadd.s32 %s201, %s199
          %s203 = smul.addr %s202, 4
          %s204 = scalar_lea.vmem %s1, %s203
        $region32: #{tpu_custom_call.1} parent=23 // pred_fallthru
          _
      $region24: #{tpu_custom_call.1} parent=5 // pred_fallthru
        _
      %p205 = scmp.le.s32.totalorder 1, %s13
      %p206 = scmp.lt.s32.totalorder %s13, 3
      %p207 = pnand %p205, %p206
      %p208 = pneg %p207
      // Predicated region
      $region33: #{tpu_custom_call.1} parent=5 // pred_check
        _
      $region34: #{tpu_custom_call.1} parent=5 // pred_check_branch
        %210 = sbr.rel (%p207) target = $region36
      $region35: #{tpu_custom_call.1} parent=5 // pred_region
        %s211 = ssub.s32 %s13, 1
        %p212 = scmp.lt.s32.totalorder %s24, 1
        %s213 = scalar_select %p212, %s24, 1
        %p214 = scmp.lt.s32.totalorder %s23, 0
        %s215 = scalar_select %p214, %s23, 0
        %s216 = sadd.s32 %s215, %s213
        %s217 = smul.addr %s216, 4
        %s218 = scalar_lea.vmem %s0, %s217
        %p219 = pneg %p60
        %p220 = pneg %p57
        %p221 = scmp.lt.s32.totalorder %s24, 1
        %s222 = scalar_select %p221, %s24, 1
        %p223 = scmp.lt.s32.totalorder %s25, 0
        %s224 = scalar_select %p223, %s25, 0
        %s225 = sadd.s32 %s224, %s222
        %s226 = smul.addr %s225, 4
        %s227 = scalar_lea.vmem %s1, %s226
        %p228 = pneg %p88
        %p229 = pneg %p85
        %p230 = pneg %p109
        %p231 = pneg %p106
        %p232 = pneg %p130
        %p233 = pneg %p127
        %p234 = pneg %p160
        %p235 = pneg %p157
        %s236 = sand.u32 %s147, 1
        %s237 = scalar_lea.sflag [#allocation3], %s236
        %s238 = sand.u32 %s147, 1
        %s239 = smul.addr %s238, 64
        %s240 = scalar_lea.vmem [#allocation2], %s239
        %p241 = scmp.lt.s32.totalorder %s24, 1
        %s242 = scalar_select %p241, %s24, 1
        %p243 = scmp.lt.s32.totalorder %s23, 0
        %s244 = scalar_select %p243, %s23, 0
        %s245 = sadd.s32 %s244, %s242
        %s246 = smul.addr %s245, 4
        %s247 = scalar_lea.vmem %s0, %s246
        %p248 = scmp.lt.s32.totalorder %s24, 1
        %s249 = scalar_select %p248, %s24, 1
        %p250 = scmp.lt.s32.totalorder %s25, 0
        %s251 = scalar_select %p250, %s25, 0
        %s252 = sadd.s32 %s251, %s249
        %s253 = smul.addr %s252, 4
        %s254 = scalar_lea.vmem %s1, %s253
        %s255 = smul.u32 8, %s23
        %v261 = vld [vmem:[%s247] sm:$0xf]
        %v262 = vld [vmem:[%s254] sm:$0xf]
        %v265 = vunpack.c.l.s4 1966171168
        %v266 = vunpack.c.0.s8 %v265
        %v267 = vlaneseq
        %v268 = vshrl.u32 %v267, 7
        %v269 = vsub.s32 %v266, %v268
        %v270 = vrot.slane %v261, %v269
        %v271 = vcombine.high %v270, %v270
        %v273 = vunpack.c.l.s4 1966171168
        %v274 = vunpack.c.0.s8 %v273
        %v275 = vlaneseq
        %v276 = vshrl.u32 %v275, 7
        %v277 = vsub.s32 %v274, %v276
        %v278 = vrot.slane %v270, %v277
        %v280 = vunpack.c.l.s4 1966171168
        %v281 = vunpack.c.0.s8 %v280
        %v282 = vlaneseq
        %v283 = vshrl.u32 %v282, 7
        %v284 = vsub.s32 %v281, %v283
        %v285 = vrot.slane %v271, %v284
        %v286 = vcombine.high %v278, %v278
        %v287 = vcombine.high %v285, %v285
        %v288 = vunpack.i.l.s16 %v278
        %v289 = vunpack.i.h.s16 %v278
        %v290 = vunpack.i.l.s16 %v285
        %v291 = vunpack.i.h.s16 %v285
        %v292 = vunpack.i.l.s16 %v286
        %v293 = vunpack.i.h.s16 %v286
        %v294 = vunpack.i.l.s16 %v287
        %v295 = vunpack.i.h.s16 %v287
        %v296 = vpack.i.b16 %v288, %v288
        %v297 = vpack.i.b16 %v289, %v289
        %v298 = vpack.i.b16 %v290, %v290
        %v299 = vpack.i.b16 %v291, %v291
        %v300 = vpack.i.b16 %v292, %v292
        %v301 = vpack.i.b16 %v293, %v293
        %v302 = vpack.i.b16 %v294, %v294
        %v303 = vpack.i.b16 %v295, %v295
        %v304 = vlaneseq
        %v305 = vshrl.u32 %v304, 7
        %v306 = vsub.s32 0, %v305
        %v307 = vrot.slane %v296, %v306
        %v308 = vlaneseq
        %v309 = vshrl.u32 %v308, 7
        %v310 = vsub.s32 0, %v309
        %v311 = vrot.slane %v297, %v310
        %v312 = vlaneseq
        %v313 = vshrl.u32 %v312, 7
        %v314 = vsub.s32 0, %v313
        %v315 = vrot.slane %v298, %v314
        %v316 = vlaneseq
        %v317 = vshrl.u32 %v316, 7
        %v318 = vsub.s32 0, %v317
        %v319 = vrot.slane %v299, %v318
        %v320 = vlaneseq
        %v321 = vshrl.u32 %v320, 7
        %v322 = vsub.s32 0, %v321
        %v323 = vrot.slane %v300, %v322
        %v324 = vlaneseq
        %v325 = vshrl.u32 %v324, 7
        %v326 = vsub.s32 0, %v325
        %v327 = vrot.slane %v301, %v326
        %v328 = vlaneseq
        %v329 = vshrl.u32 %v328, 7
        %v330 = vsub.s32 0, %v329
        %v331 = vrot.slane %v302, %v330
        %v332 = vlaneseq
        %v333 = vshrl.u32 %v332, 7
        %v334 = vsub.s32 0, %v333
        %v335 = vrot.slane %v303, %v334
        %v337 = vpack.i.b16 %v307, %v307
        %v339 = vlaneseq
        %v340 = vshrl.u32 %v339, 7
        %v341 = vsub.s32 0, %v340
        %v342 = vrot.slane %v337, %v341
        %v344 = vpack.i.b16 %v311, %v311
        %v346 = vlaneseq
        %v347 = vshrl.u32 %v346, 7
        %v348 = vsub.s32 0, %v347
        %v349 = vrot.slane %v344, %v348
        %v351 = vpack.i.b16 %v315, %v315
        %v353 = vlaneseq
        %v354 = vshrl.u32 %v353, 7
        %v355 = vsub.s32 0, %v354
        %v356 = vrot.slane %v351, %v355
        %v358 = vpack.i.b16 %v319, %v319
        %v360 = vlaneseq
        %v361 = vshrl.u32 %v360, 7
        %v362 = vsub.s32 0, %v361
        %v363 = vrot.slane %v358, %v362
        %v365 = vpack.i.b16 %v323, %v323
        %v367 = vlaneseq
        %v368 = vshrl.u32 %v367, 7
        %v369 = vsub.s32 0, %v368
        %v370 = vrot.slane %v365, %v369
        %v372 = vpack.i.b16 %v327, %v327
        %v374 = vlaneseq
        %v375 = vshrl.u32 %v374, 7
        %v376 = vsub.s32 0, %v375
        %v377 = vrot.slane %v372, %v376
        %v379 = vpack.i.b16 %v331, %v331
        %v381 = vlaneseq
        %v382 = vshrl.u32 %v381, 7
        %v383 = vsub.s32 0, %v382
        %v384 = vrot.slane %v379, %v383
        %v386 = vpack.i.b16 %v335, %v335
        %v388 = vlaneseq
        %v389 = vshrl.u32 %v388, 7
        %v390 = vsub.s32 0, %v389
        %v391 = vrot.slane %v386, %v390
        %v392 = vadd.bf16 %v342, %v262
        %v393 = vadd.bf16 %v349, %v262
        %v394 = vadd.bf16 %v356, %v262
        %v395 = vadd.bf16 %v363, %v262
        %v396 = vadd.bf16 %v370, %v262
        %v397 = vadd.bf16 %v377, %v262
        %v398 = vadd.bf16 %v384, %v262
        %v399 = vadd.bf16 %v391, %v262
        %v400 = vmul.bf16 %v392, %v392
        %v401 = vmul.bf16 %v393, %v393
        %v402 = vmul.bf16 %v394, %v394
        %v403 = vmul.bf16 %v395, %v395
        %v404 = vmul.bf16 %v396, %v396
        %v405 = vmul.bf16 %v397, %v397
        %v406 = vmul.bf16 %v398, %v398
        %v407 = vmul.bf16 %v399, %v399
        %v408 = vmul.bf16 %v392, %v400
        %v409 = vmul.bf16 %v393, %v401
        %v410 = vmul.bf16 %v394, %v402
        %v411 = vmul.bf16 %v395, %v403
        %v412 = vmul.bf16 %v396, %v404
        %v413 = vmul.bf16 %v397, %v405
        %v414 = vmul.bf16 %v398, %v406
        %v415 = vmul.bf16 %v399, %v407
        %v416 = vmul.bf16 %v408, 1027030327
        %v417 = vmul.bf16 %v409, 1027030327
        %v418 = vmul.bf16 %v410, 1027030327
        %v419 = vmul.bf16 %v411, 1027030327
        %v420 = vmul.bf16 %v412, 1027030327
        %v421 = vmul.bf16 %v413, 1027030327
        %v422 = vmul.bf16 %v414, 1027030327
        %v423 = vmul.bf16 %v415, 1027030327
        %v424 = vadd.bf16 %v392, %v416
        %v425 = vadd.bf16 %v393, %v417
        %v426 = vadd.bf16 %v394, %v418
        %v427 = vadd.bf16 %v395, %v419
        %v428 = vadd.bf16 %v396, %v420
        %v429 = vadd.bf16 %v397, %v421
        %v430 = vadd.bf16 %v398, %v422
        %v431 = vadd.bf16 %v399, %v423
        %v432 = vmul.bf16 %v424, 1061961548
        %v433 = vmul.bf16 %v425, 1061961548
        %v434 = vmul.bf16 %v426, 1061961548
        %v435 = vmul.bf16 %v427, 1061961548
        %v436 = vmul.bf16 %v428, 1061961548
        %v437 = vmul.bf16 %v429, 1061961548
        %v438 = vmul.bf16 %v430, 1061961548
        %v439 = vmul.bf16 %v431, 1061961548
        %v440 = vtanh.bf16.pop %v432
        %v441 = vtanh.bf16.pop %v433
        %v442 = vtanh.bf16.pop %v434
        %v443 = vtanh.bf16.pop %v435
        %v444 = vtanh.bf16.pop %v436
        %v445 = vtanh.bf16.pop %v437
        %v446 = vtanh.bf16.pop %v438
        %v447 = vtanh.bf16.pop %v439
        %v448 = vadd.bf16 %v440, 1065369472
        %v449 = vadd.bf16 %v441, 1065369472
        %v450 = vadd.bf16 %v442, 1065369472
        %v451 = vadd.bf16 %v443, 1065369472
        %v452 = vadd.bf16 %v444, 1065369472
        %v453 = vadd.bf16 %v445, 1065369472
        %v454 = vadd.bf16 %v446, 1065369472
        %v455 = vadd.bf16 %v447, 1065369472
        %v456 = vmul.bf16 %v448, 1056980736
        %v457 = vmul.bf16 %v449, 1056980736
        %v458 = vmul.bf16 %v450, 1056980736
        %v459 = vmul.bf16 %v451, 1056980736
        %v460 = vmul.bf16 %v452, 1056980736
        %v461 = vmul.bf16 %v453, 1056980736
        %v462 = vmul.bf16 %v454, 1056980736
        %v463 = vmul.bf16 %v455, 1056980736
        %v464 = vmul.bf16 %v392, %v456
        %v465 = vmul.bf16 %v393, %v457
        %v466 = vmul.bf16 %v394, %v458
        %v467 = vmul.bf16 %v395, %v459
        %v468 = vmul.bf16 %v396, %v460
        %v469 = vmul.bf16 %v397, %v461
        %v470 = vmul.bf16 %v398, %v462
        %v471 = vmul.bf16 %v399, %v463
        %v472 = vld [vmem:[%s2] sm:$0xf]
        %v473 = vld [vmem:[%s2 + $0x4] sm:$0xf]
        %v474 = vld [vmem:[%s2 + $0x8] sm:$0xf]
        %v475 = vld [vmem:[%s2 + $0xc] sm:$0xf]
        %v476 = vld [vmem:[%s3] sm:$0x1]
        %v478 = vlaneseq
        %v479 = vshrl.u32 %v478, 7
        %v480 = vsub.s32 0, %v479
        %v481 = vrot.slane %v476, %v480
        %v491 = vunpack.c.l.b16 %v464
        %v492 = vunpack.c.l.b16 %v465
        %v493 = vunpack.c.l.b16 %v466
        %v494 = vunpack.c.l.b16 %v467
        %v495 = vunpack.c.l.b16 %v468
        %v496 = vunpack.c.l.b16 %v469
        %v497 = vunpack.c.l.b16 %v470
        %v498 = vunpack.c.l.b16 %v471
        %v499 = vpack.c.b16 %v492, %v491
        %v500 = vpack.c.b16 %v494, %v493
        %v501 = vpack.c.b16 %v496, %v495
        %v502 = vpack.c.b16 %v498, %v497
        %v507 = vunpack.c.l.b16 %v472
        %v508 = vunpack.c.l.b16 %v473
        %v509 = vunpack.c.l.b16 %v474
        %v510 = vunpack.c.l.b16 %v475
        %v511 = vpack.c.b16 %v508, %v507
        %v512 = vpack.c.b16 %v510, %v509
        %vm515 = vcmask 261120
        %v517 = vsel %vm515, %v499, 0
        %v520 = vsel %vm515, %v500, 0
        %v523 = vsel %vm515, %v501, 0
        %v526 = vsel %vm515, %v502, 0
        %528 = vmatprep.subr.bf16.mxu0 0
        %529 = vmatpush1.bf16.msra.mxu0 %v511
        %530 = vmatprep.subr.bf16.mxu0 0
        %531 = vmatpush1.bf16.msra.mxu0 %v512
        %532 = vmatprep.subr.bf16.mxu0 0
        %533 = vmatpush1.bf16.msra.mxu0 0
        %534 = vmatprep.subr.bf16.mxu0 0
        %535 = vmatpush1.bf16.msra.mxu0 0
        %536 = vmatprep.subr.bf16.mxu0 0
        %537 = vmatpush1.bf16.msra.mxu0 0
        %538 = vmatprep.subr.bf16.mxu0 0
        %539 = vmatpush1.bf16.msra.mxu0 0
        %540 = vmatprep.subr.bf16.mxu0 0
        %541 = vmatpush1.bf16.msra.mxu0 0
        %542 = vmatprep.subr.bf16.mxu0 0
        %543 = vmatpush1.bf16.msra.mxu0 0
        %544 = vmatprep.subr.bf16.mxu0 0
        %545 = vmatpush1.bf16.msra.mxu0 0
        %546 = vmatprep.subr.bf16.mxu0 0
        %547 = vmatpush1.bf16.msra.mxu0 0
        %548 = vmatprep.subr.bf16.mxu0 0
        %549 = vmatpush1.bf16.msra.mxu0 0
        %550 = vmatprep.subr.bf16.mxu0 0
        %551 = vmatpush1.bf16.msra.mxu0 0
        %552 = vmatprep.subr.bf16.mxu0 0
        %553 = vmatpush1.bf16.msra.mxu0 0
        %554 = vmatprep.subr.bf16.mxu0 0
        %555 = vmatpush1.bf16.msra.mxu0 0
        %556 = vmatprep.subr.bf16.mxu0 0
        %557 = vmatpush1.bf16.msra.mxu0 0
        %558 = vmatprep.subr.bf16.mxu0 0
        %559 = vmatpush1.bf16.msra.mxu0 0
        %560 = vmatprep.mubr.bf16.mxu0 0
        %561 = vmatmul.mubr.bf16.gmra.mrb[0].mxu0 %v517
        %v562 = vpop.f32.mrb[0].mxu0
        %v563 = vadd.f32 %v481, %v562
        %v564 = vpop.f32.mrb[0].mxu0
        %v565 = vpop.f32.mrb[0].mxu0
        %v566 = vadd.f32 %v481, %v565
        %v567 = vpop.f32.mrb[0].mxu0
        %568 = vmatprep.mubr.bf16.mxu0 0
        %569 = vmatmul.mubr.bf16.gmra.mrb[0].mxu0 %v520
        %v570 = vpop.f32.mrb[0].mxu0
        %v571 = vadd.f32 %v481, %v570
        %v572 = vpop.f32.mrb[0].mxu0
        %v573 = vpop.f32.mrb[0].mxu0
        %v574 = vadd.f32 %v481, %v573
        %v575 = vpop.f32.mrb[0].mxu0
        %576 = vmatprep.mubr.bf16.mxu0 0
        %577 = vmatmul.mubr.bf16.gmra.mrb[0].mxu0 %v523
        %v578 = vpop.f32.mrb[0].mxu0
        %v579 = vadd.f32 %v481, %v578
        %v580 = vpop.f32.mrb[0].mxu0
        %v581 = vpop.f32.mrb[0].mxu0
        %v582 = vadd.f32 %v481, %v581
        %v583 = vpop.f32.mrb[0].mxu0
        %584 = vmatprep.mubr.bf16.mxu0 0
        %585 = vmatmul.mubr.bf16.gmra.mrb[0].mxu0 %v526
        %v586 = vpop.f32.mrb[0].mxu0
        %v587 = vadd.f32 %v481, %v586
        %v588 = vpop.f32.mrb[0].mxu0
        %v589 = vpop.f32.mrb[0].mxu0
        %v590 = vadd.f32 %v481, %v589
        %v591 = vpop.f32.mrb[0].mxu0
        %592 = vdwg.mxu0
        %s593 = smul.u32 0, 8
        %s594 = scalar_lea.vmem %s240, %s593 [#allocation2]
        %vm595 = vcmask 195584
        %596 = vst.msk [vmem:[%s594] sm:$0xff] %vm595, %v563
        %597 = vst.msk [vmem:[%s594 + $0x8] sm:$0xff] %vm595, %v566
        %598 = vst.msk [vmem:[%s594 + $0x10] sm:$0xff] %vm595, %v571
        %599 = vst.msk [vmem:[%s594 + $0x18] sm:$0xff] %vm595, %v574
        %600 = vst.msk [vmem:[%s594 + $0x20] sm:$0xff] %vm595, %v579
        %601 = vst.msk [vmem:[%s594 + $0x28] sm:$0xff] %vm595, %v582
        %602 = vst.msk [vmem:[%s594 + $0x30] sm:$0xff] %vm595, %v587
        %603 = vst.msk [vmem:[%s594 + $0x38] sm:$0xff] %vm595, %v590
        %s604 = sand.u32 %s147, 1
        %s605 = scalar_lea.sflag [#allocation3], %s604
        %s606 = sand.u32 %s147, 1
        %s607 = smul.addr %s606, 64
        %s608 = scalar_lea.vmem [#allocation2], %s607
        // Predicated region
        $region37: #{tpu_custom_call.1} parent=35 // pred_check
          %p609 = pneg %p157
        $region38: #{tpu_custom_call.1} parent=35 // pred_check_branch
          %611 = sbr.rel (%p609) target = $region40
        $region39: #{tpu_custom_call.1} parent=35 // pred_region
          %s612 = smul.u32 8, %s23
          %s614 = ssub.s32 1024, 1024
          %615 = vsyncadd %s605, %s614
          %s616 = sadd.s32 %s25, %s612
          %s617 = smul.addr %s24, 8
          %s618 = sadd.s32 %s616, %s617
          %s619 = smul.addr %s618, 128
          %s620 = scalar_lea.hbm %s4, %s619
          %s621 = sshll.u32 %s608, 4
          %s622 = int_to_ptr.vmem [resolvable:$true] %s621
          %627 = dma.vmem_to_hbm [thread:$0]  %s622, 1024, %s620, %s605, 128, 128, 8
        $region40: #{tpu_custom_call.1} parent=35 // pred_fallthru
          _
      $region36: #{tpu_custom_call.1} parent=5 // pred_fallthru
        _
      %p628 = scmp.le.s32.totalorder 2, %s13
      // Predicated region
      $region41: #{tpu_custom_call.1} parent=5 // pred_check
        %p629 = pneg %p628
      $region42: #{tpu_custom_call.1} parent=5 // pred_check_branch
        %631 = sbr.rel (%p629) target = $region44
      $region43: #{tpu_custom_call.1} parent=5 // pred_region
        %s632 = ssub.s32 %s13, 2
        // Predicated region
        $region45: #{tpu_custom_call.1} parent=43 // pred_check
          %p633 = pneg %p163
        $region46: #{tpu_custom_call.1} parent=43 // pred_check_branch
          %635 = sbr.rel (%p633) target = $region48
        $region47: #{tpu_custom_call.1} parent=43 // pred_region
          %s636 = sand.u32 %s148, 1
          %s637 = scalar_lea.sflag [#allocation3], %s636
          %s638 = sand.u32 %s148, 1
          %s639 = smul.addr %s638, 64
          %s640 = scalar_lea.vmem [#allocation2], %s639
          %641 = dma.done %s637, 1024
        $region48: #{tpu_custom_call.1} parent=43 // pred_fallthru
          _
      $region44: #{tpu_custom_call.1} parent=5 // pred_fallthru
        _
    $region6: #{tpu_custom_call.1} parent=1 // loop_footer
      %s17 = sadd.s32 1, %s13
    $region7: #{tpu_custom_call.1} parent=1 // loop_footer_branch
      %12 = sbr.rel target = $region3
    $region8: #{tpu_custom_call.1} parent=1 // loop_exit
      _
    %642 = vsyncpa [#allocation3], 1
    %s643 = scalar_lea.sflag [#allocation3], 1
    %644 = vsyncpa %s643, 1

</llo_original>
